<compile_context>
chip_gen: v5e
topology: v5e:2x2
jax: 0.10.0
libtpu: 0.0.40
codegen_flags: <defaults>
</compile_context>

<pallas_src>
import jax
import jax.numpy as jnp
from jax.experimental import pallas as pl
from jax.experimental.pallas import tpu as pltpu

BN_EPS = 1e-5
LANE = 128


def _round_up(n, m):
    return ((n + m - 1) // m) * m


def _stats_kernel(x_ref, w1_ref, sum_ref, sq_ref):
    """Pass 1: accumulate per-feature sum / sum-of-squares of h_lin = x @ W1.

    Padded batch rows of x are zero, so they contribute nothing to either
    accumulator; the division by the *real* batch size happens on the host.
    """
    i = pl.program_id(0)

    @pl.when(i == 0)
    def _():
        sum_ref[...] = jnp.zeros_like(sum_ref)
        sq_ref[...] = jnp.zeros_like(sq_ref)

    h = jnp.dot(x_ref[...], w1_ref[...], preferred_element_type=jnp.float32)
    sum_ref[...] += jnp.sum(h, axis=0, keepdims=True)
    sq_ref[...] += jnp.sum(h * h, axis=0, keepdims=True)


def _apply_kernel(x_ref, w1_ref, scale_ref, shift_ref, w2_ref, b2_ref, o_ref):
    """Pass 2: y = relu((x @ W1) * scale + shift) @ W2 + b2 (BN folded to FMA)."""
    h = jnp.dot(x_ref[...], w1_ref[...], preferred_element_type=jnp.float32)
    h = jnp.maximum(h * scale_ref[...] + shift_ref[...], 0.0)
    o_ref[...] = (jnp.dot(h, w2_ref[...], preferred_element_type=jnp.float32)
                  + b2_ref[...])


def mlp_head(x, w1, b1, gamma, beta, w2, b2, *, block_b=256):
    """Forward pass of MLPHead with training-mode BatchNorm1d statistics.

    x:      [B, C_in]
    w1:     [C_in, D_in]   (PyTorch Linear weight, pre-transposed)
    b1:     [1, D_in]      (cancels analytically inside training-mode BN)
    gamma:  [1, D_in]
    beta:   [1, D_in]
    w2:     [D_in, D_out]
    b2:     [1, D_out]
    """
    del b1  # Linear-1 bias cancels exactly inside BatchNorm (batch-stat mode).

    f32 = jnp.float32
    B, C_in = x.shape
    D_in = w1.shape[1]
    D_out = w2.shape[1]

    d_pad = _round_up(D_in, LANE)       # lane-dense intermediate features
    do_pad = _round_up(D_out, LANE)     # lane-dense output features
    tb = min(block_b, _round_up(B, 8))  # batch tile (sublane-aligned)
    b_pad = _round_up(B, tb)
    nbt = b_pad // tb

    # Zero-pad operands into the lane-dense layout (padded feature columns end
    # up with scale = shift = 0, so they contribute exactly zero downstream).
    xp = jnp.zeros((b_pad, C_in), f32).at[:B, :].set(x.astype(f32))
    w1p = jnp.zeros((C_in, d_pad), f32).at[:, :D_in].set(w1.astype(f32))
    w2p = jnp.zeros((d_pad, do_pad), f32).at[:D_in, :D_out].set(w2.astype(f32))
    gp = jnp.zeros((1, d_pad), f32).at[:, :D_in].set(
        jnp.reshape(gamma, (1, D_in)).astype(f32))
    bp = jnp.zeros((1, d_pad), f32).at[:, :D_in].set(
        jnp.reshape(beta, (1, D_in)).astype(f32))
    b2p = jnp.zeros((1, do_pad), f32).at[:, :D_out].set(
        jnp.reshape(b2, (1, D_out)).astype(f32))

    # ---- Pass 1: batch statistics (cross-tile reduction -> accumulator). ----
    sums, sqs = pl.pallas_call(
        _stats_kernel,
        out_shape=(jax.ShapeDtypeStruct((1, d_pad), f32),
                   jax.ShapeDtypeStruct((1, d_pad), f32)),
        grid_spec=pltpu.PrefetchScalarGridSpec(
            num_scalar_prefetch=0,
            grid=(nbt,),
            in_specs=[pl.BlockSpec((tb, C_in), lambda i: (i, 0)),
                      pl.BlockSpec((C_in, d_pad), lambda i: (0, 0))],
            out_specs=[pl.BlockSpec((1, d_pad), lambda i: (0, 0)),
                       pl.BlockSpec((1, d_pad), lambda i: (0, 0))]),
        compiler_params=pltpu.CompilerParams(
            dimension_semantics=("arbitrary",)),
    )(xp, w1p)

    # ---- Fold BN into one per-feature scale/shift (tiny [1, D] math). -------
    inv_b = jnp.float32(1.0 / B)
    mean_lin = sums * inv_b
    var = jnp.maximum(sqs * inv_b - mean_lin * mean_lin, 0.0)  # biased variance
    scale = gp * jax.lax.rsqrt(var + BN_EPS)
    shift = bp - mean_lin * scale

    # ---- Pass 2: normalize + ReLU + second Linear (parallel over tiles). ----
    out_p = pl.pallas_call(
        _apply_kernel,
        out_shape=jax.ShapeDtypeStruct((b_pad, do_pad), f32),
        grid_spec=pltpu.PrefetchScalarGridSpec(
            num_scalar_prefetch=0,
            grid=(nbt,),
            in_specs=[pl.BlockSpec((tb, C_in), lambda i: (i, 0)),
                      pl.BlockSpec((C_in, d_pad), lambda i: (0, 0)),
                      pl.BlockSpec((1, d_pad), lambda i: (0, 0)),
                      pl.BlockSpec((1, d_pad), lambda i: (0, 0)),
                      pl.BlockSpec((d_pad, do_pad), lambda i: (0, 0)),
                      pl.BlockSpec((1, do_pad), lambda i: (0, 0))],
            out_specs=pl.BlockSpec((tb, do_pad), lambda i: (i, 0))),
        compiler_params=pltpu.CompilerParams(
            dimension_semantics=("parallel",)),
    )(xp, w1p, scale, shift, w2p, b2p)

    return out_p[:B, :D_out]


def reference_mlp_head(x, w1, b1, gamma, beta, w2, b2):
    h = x @ w1 + b1
    mean = jnp.mean(h, axis=0, keepdims=True)
    var = jnp.mean((h - mean) ** 2, axis=0, keepdims=True)
    h = (h - mean) / jnp.sqrt(var + BN_EPS) * gamma + beta
    h = jnp.maximum(h, 0.0)
    return h @ w2 + b2


if __name__ == "__main__":
    # Small shapes consistent with the module:
    #   input_channel=16, projection_in_dimension=32, projection_out_dimension=8
    B, C_IN, D_IN, D_OUT = 8, 16, 32, 8

    key = jax.random.PRNGKey(0)
    kx, kw1, kb1, kw2, kb2, kg, kb = jax.random.split(key, 7)

    x = jax.random.normal(kx, (B, C_IN), dtype=jnp.float32)

    # Deterministic synthetic parameters (PyTorch Linear weight is [out, in];
    # we store the transposed [in, out] form for the kernel).
    w1 = jax.random.normal(kw1, (C_IN, D_IN), dtype=jnp.float32) * 0.1
    b1 = jax.random.normal(kb1, (1, D_IN), dtype=jnp.float32) * 0.1
    gamma = 1.0 + 0.1 * jax.random.normal(kg, (1, D_IN), dtype=jnp.float32)
    beta = 0.1 * jax.random.normal(kb, (1, D_IN), dtype=jnp.float32)
    w2 = jax.random.normal(kw2, (D_IN, D_OUT), dtype=jnp.float32) * 0.1
    b2 = jax.random.normal(kb2, (1, D_OUT), dtype=jnp.float32) * 0.1

    out = mlp_head(x, w1, b1, gamma, beta, w2, b2)
    out = jax.block_until_ready(out)

    ref = reference_mlp_head(x, w1, b1, gamma, beta, w2, b2)
    assert out.shape == (B, D_OUT)
    assert jnp.allclose(out, ref, atol=1e-4, rtol=1e-4), "mismatch vs reference"

    print("KERNEL_OK")
</pallas_src>

<mosaic_0001>
module attributes {stable_mosaic.version = 11 : i64} {
  func.func @_stats_kernel(%arg0: i32, %arg1: memref<8x16xf32, #tpu.memory_space<vmem>>, %arg2: memref<16x128xf32, #tpu.memory_space<vmem>>, %arg3: memref<1x128xf32, #tpu.memory_space<vmem>>, %arg4: memref<1x128xf32, #tpu.memory_space<vmem>>) attributes {dimension_semantics = [#tpu.dimension_semantics<arbitrary>], iteration_bounds = array<i64: 1>, scalar_prefetch = 0 : i64, scratch_operands = 0 : i64, tpu.core_type = #tpu.core_type<tc>, window_params = [{transform_indices = @transform_0, window_bounds = array<i64: 8, 16>}, {pipeline_mode = #tpu.pipeline_mode<synchronous>, transform_indices = @transform_1, window_bounds = array<i64: 16, 128>}, {pipeline_mode = #tpu.pipeline_mode<synchronous>, transform_indices = @transform_2, window_bounds = array<i64: 1, 128>}, {pipeline_mode = #tpu.pipeline_mode<synchronous>, transform_indices = @transform_3, window_bounds = array<i64: 1, 128>}]} {
    %c0_i32 = arith.constant 0 : i32
    %0 = arith.cmpi eq, %arg0, %c0_i32 : i32
    %1 = arith.extui %0 : i1 to i32
    %c0_i32_0 = arith.constant 0 : i32
    %2 = arith.cmpi ne, %1, %c0_i32_0 : i32
    scf.if %2 {
      %cst_14 = arith.constant 0.000000e+00 : f32
      %17 = vector.broadcast %cst_14 : f32 to vector<1x128xf32>
      %c0_15 = arith.constant 0 : index
      %c0_16 = arith.constant 0 : index
      %18 = vector.load %arg3[%c0_15, %c0_16] : memref<1x128xf32, #tpu.memory_space<vmem>>, vector<1x128xf32>
      tpu.vector_store %arg3[%c0_15, %c0_16], %17 {strides = array<i32>} : memref<1x128xf32, #tpu.memory_space<vmem>>, vector<1x128xf32>,
      %cst_17 = arith.constant 0.000000e+00 : f32
      %19 = vector.broadcast %cst_17 : f32 to vector<1x128xf32>
      %c0_18 = arith.constant 0 : index
      %c0_19 = arith.constant 0 : index
      %20 = vector.load %arg4[%c0_18, %c0_19] : memref<1x128xf32, #tpu.memory_space<vmem>>, vector<1x128xf32>
      tpu.vector_store %arg4[%c0_18, %c0_19], %19 {strides = array<i32>} : memref<1x128xf32, #tpu.memory_space<vmem>>, vector<1x128xf32>,
    } else {
    }
    %c0 = arith.constant 0 : index
    %c0_1 = arith.constant 0 : index
    %3 = vector.load %arg1[%c0, %c0_1] : memref<8x16xf32, #tpu.memory_space<vmem>>, vector<8x16xf32>
    %c0_2 = arith.constant 0 : index
    %c0_3 = arith.constant 0 : index
    %4 = vector.load %arg2[%c0_2, %c0_3] : memref<16x128xf32, #tpu.memory_space<vmem>>, vector<16x128xf32>
    %cst = arith.constant dense<0.000000e+00> : vector<8x128xf32>
    %5 = tpu.matmul %3, %4, %cst {dimension_numbers = #tpu.dot_dimension_numbers<[1], [0], [0], [1], [0, 0, 1, 1], [], []>} : vector<8x16xf32>, vector<16x128xf32>, vector<8x128xf32> -> vector<8x128xf32>
    %c0_4 = arith.constant 0 : index
    %c0_5 = arith.constant 0 : index
    %6 = vector.load %arg3[%c0_4, %c0_5] : memref<1x128xf32, #tpu.memory_space<vmem>>, vector<1x128xf32>
    %cst_6 = arith.constant dense<0.000000e+00> : vector<128xf32>
    %7 = vector.multi_reduction <add>, %5, %cst_6 [0] : vector<8x128xf32> to vector<128xf32>
    %8 = vector.shape_cast %7 : vector<128xf32> to vector<1x128xf32>
    %9 = arith.addf %6, %8 : vector<1x128xf32>
    %c0_7 = arith.constant 0 : index
    %c0_8 = arith.constant 0 : index
    %10 = vector.load %arg3[%c0_7, %c0_8] : memref<1x128xf32, #tpu.memory_space<vmem>>, vector<1x128xf32>
    tpu.vector_store %arg3[%c0_7, %c0_8], %9 {strides = array<i32>} : memref<1x128xf32, #tpu.memory_space<vmem>>, vector<1x128xf32>,
    %c0_9 = arith.constant 0 : index
    %c0_10 = arith.constant 0 : index
    %11 = vector.load %arg4[%c0_9, %c0_10] : memref<1x128xf32, #tpu.memory_space<vmem>>, vector<1x128xf32>
    %12 = arith.mulf %5, %5 : vector<8x128xf32>
    %cst_11 = arith.constant dense<0.000000e+00> : vector<128xf32>
    %13 = vector.multi_reduction <add>, %12, %cst_11 [0] : vector<8x128xf32> to vector<128xf32>
    %14 = vector.shape_cast %13 : vector<128xf32> to vector<1x128xf32>
    %15 = arith.addf %11, %14 : vector<1x128xf32>
    %c0_12 = arith.constant 0 : index
    %c0_13 = arith.constant 0 : index
    %16 = vector.load %arg4[%c0_12, %c0_13] : memref<1x128xf32, #tpu.memory_space<vmem>>, vector<1x128xf32>
    tpu.vector_store %arg4[%c0_12, %c0_13], %15 {strides = array<i32>} : memref<1x128xf32, #tpu.memory_space<vmem>>, vector<1x128xf32>,
    return
  }
  func.func @transform_0(%arg0: i32) -> (i32, i32) {
    %c0_i32 = arith.constant 0 : i32
    %c0_i32_0 = arith.constant 0 : i32
    return %arg0, %c0_i32 : i32, i32
  }
  func.func @transform_1(%arg0: i32) -> (i32, i32) {
    %c0_i32 = arith.constant 0 : i32
    %c0_i32_0 = arith.constant 0 : i32
    %c0_i32_1 = arith.constant 0 : i32
    return %c0_i32, %c0_i32_0 : i32, i32
  }
  func.func @transform_2(%arg0: i32) -> (i32, i32) {
    %c0_i32 = arith.constant 0 : i32
    %c0_i32_0 = arith.constant 0 : i32
    %c0_i32_1 = arith.constant 0 : i32
    return %c0_i32, %c0_i32_0 : i32, i32
  }
  func.func @transform_3(%arg0: i32) -> (i32, i32) {
    %c0_i32 = arith.constant 0 : i32
    %c0_i32_0 = arith.constant 0 : i32
    %c0_i32_1 = arith.constant 0 : i32
    return %c0_i32, %c0_i32_0 : i32, i32
  }
}

</mosaic_0001>

<llo_original>
// kernel: tpu_custom_call.1
$region0: #{tpu_custom_call.1}
  #allocation0 [shape = 'u32[]', space=smem, size = 0x4, offset = 0x4, fixed_abs, tag = 'smem constant byte address 0x4 - core index']
  #allocation1 [shape = 'u32[72,128]{1,0:T(1,128)}', space=vmem, size = 0x9000, scoped, tag = 'internal scratch']
  %s0 = inlined_call_operand.hbm [shape: f32[8,16], index: 0, kind: input, shape index: {}]
  %s1 = inlined_call_operand.hbm [shape: f32[16,128], index: 1, kind: input, shape index: {}]
  %s2 = inlined_call_operand.hbm [shape: f32[1,128], index: 2, kind: output, shape index: {0}]
  %s3 = inlined_call_operand.hbm [shape: f32[1,128], index: 3, kind: output, shape index: {1}]
  %4 = xla_tuple %s2, %s3
  %s5 = sld [smem:[#allocation0]]
  $region38: #{tpu_custom_call.1} parent=0
    _
  %s7 = ssub.s32 1, %s5
  %s8 = scalar_select 0, %s7, %s5
  $region1: #{tpu_custom_call.1} parent=0
    #allocation2 [shape = 'u8[4096]{0}', space=vmem, size = 0x1000, scoped, tag = 'input window, operand 0, single buffered']
    #allocation3 [shape = 's32[1]{0}', space=sflag, size = 0x4, scoped, tag = 'scoped memory for tpu_custom_call.1']
    #allocation4 [shape = 's32[1]{0}', space=sflag, size = 0x4, scoped, tag = 'scoped memory for tpu_custom_call.1']
    #allocation5 [shape = 'u8[8192]{0}', space=vmem, size = 0x2000, scoped, tag = 'input window, operand 1, single buffered']
    #allocation6 [shape = 's32[1]{0}', space=sflag, size = 0x4, scoped, tag = 'scoped memory for tpu_custom_call.1']
    #allocation7 [shape = 'u8[512]{0}', space=vmem, size = 0x400, scoped, tag = 'output window, operand 0, single buffered']
    #allocation8 [shape = 'u8[512]{0}', space=vmem, size = 0x400, scoped, tag = 'output window, operand 1, single buffered']
    #allocation9 [shape = 's32[1]{0}', space=sflag, size = 0x4, scoped, tag = 'scoped memory for tpu_custom_call.1']
    %9 = vsyncpa [#allocation3], 0
    %10 = vsyncpa [#allocation6], 0
    %11 = vsyncpa [#allocation4], 0
    %12 = vsyncpa [#allocation9], 0
    // Predicated region
    $region2: #{tpu_custom_call.1} parent=1 // pred_check
      _
    $region3: #{tpu_custom_call.1} parent=1 // pred_check_branch
      %14 = sbr.rel (0) target = $region5
    $region4: #{tpu_custom_call.1} parent=1 // pred_region
      %16 = vsyncadd [#allocation3], 0
      %s18 = sshll.u32 %s0, 4
      %s19 = int_to_ptr.hbm [resolvable:$true] %s18
      %s20 = sshll.u32 [#allocation2], 4
      %s21 = int_to_ptr.vmem [resolvable:$true] %s20
      %23 = dma.hbm_to_vmem [thread:$0]  %s19, 128, %s21, [#allocation3]
    $region5: #{tpu_custom_call.1} parent=1 // pred_fallthru
      _
    // Predicated region
    $region6: #{tpu_custom_call.1} parent=1 // pred_check
      _
    $region7: #{tpu_custom_call.1} parent=1 // pred_check_branch
      %25 = sbr.rel (0) target = $region9
    $region8: #{tpu_custom_call.1} parent=1 // pred_region
      %27 = vsyncadd [#allocation6], 0
      %s28 = sshll.u32 %s1, 4
      %s29 = int_to_ptr.hbm [resolvable:$true] %s28
      %s30 = sshll.u32 [#allocation5], 4
      %s31 = int_to_ptr.vmem [resolvable:$true] %s30
      %36 = dma.hbm_to_vmem [thread:$0]  %s29, 256, %s31, [#allocation6], 128, 128, 8
    $region9: #{tpu_custom_call.1} parent=1 // pred_fallthru
      _
    // Predicated region
    $region10: #{tpu_custom_call.1} parent=1 // pred_check
      _
    $region11: #{tpu_custom_call.1} parent=1 // pred_check_branch
      %38 = sbr.rel (0) target = $region13
    $region12: #{tpu_custom_call.1} parent=1 // pred_region
      %40 = dma.done [#allocation3], 128
    $region13: #{tpu_custom_call.1} parent=1 // pred_fallthru
      _
    // Predicated region
    $region14: #{tpu_custom_call.1} parent=1 // pred_check
      _
    $region15: #{tpu_custom_call.1} parent=1 // pred_check_branch
      %42 = sbr.rel (0) target = $region17
    $region16: #{tpu_custom_call.1} parent=1 // pred_region
      %44 = dma.done [#allocation6], 256
    $region17: #{tpu_custom_call.1} parent=1 // pred_fallthru
      _
    %p45 = scmp.eq.s32.totalorder 0, 0
    // Predicated region
    $region18: #{tpu_custom_call.1} parent=1 // pred_check
      %p46 = pneg %p45
    $region19: #{tpu_custom_call.1} parent=1 // pred_check_branch
      %48 = sbr.rel (%p46) target = $region21
    $region20: #{tpu_custom_call.1} parent=1 // pred_region
      %49 = vst [vmem:[#allocation7] sm:$0x1] 0.0
      %50 = vst [vmem:[#allocation8] sm:$0x1] 0.0
    $region21: #{tpu_custom_call.1} parent=1 // pred_fallthru
      _
    %v51 = vld [vmem:[#allocation2] sm:$0xff]
    %v52 = vld [vmem:[#allocation5] sm:$0xff]
    %v53 = vld [vmem:[#allocation5 + $0x8] sm:$0xff]
    %vm54 = vcmask 130048
    %v56 = vsel %vm54, %v51, 0
    %58 = vmatpush.msra.mxu0 0.0
    %59 = vmatpush.msra.mxu0 0.0
    %60 = vmatpush.msra.mxu0 0.0
    %61 = vmatpush.msra.mxu0 0.0
    %62 = vmatpush.msra.mxu0 0.0
    %63 = vmatpush.msra.mxu0 0.0
    %64 = vmatpush.msra.mxu0 0.0
    %65 = vmatpush.msra.mxu0 0.0
    %66 = vmatpush.msra.mxu0 0.0
    %67 = vmatpush.msra.mxu0 0.0
    %68 = vmatpush.msra.mxu0 0.0
    %69 = vmatpush.msra.mxu0 0.0
    %70 = vmatpush.msra.mxu0 0.0
    %71 = vmatpush.msra.mxu0 0.0
    %72 = vmatpush.msra.mxu0 %v53
    %73 = vmatpush.msra.mxu0 %v52
    %74 = vmatmul.f32.gmra.mxu0 %v56
    %v75 = vpop.f32.mrf.mxu0
    %v76 = vadd.f32 0.0, %v75
    %77 = vdwg.mxu0
    %v78 = vld [vmem:[#allocation7] sm:$0x1]
    %v79 = vrot.slane %v76, 4
    %v80 = vadd.f32 %v76, %v79
    %v81 = vrot.slane %v80, 2
    %v82 = vadd.f32 %v80, %v81
    %v83 = vrot.slane %v82, 1
    %v84 = vadd.f32 %v82, %v83
    %v85 = vadd.f32 %v78, %v84
    %86 = vst [vmem:[#allocation7] sm:$0x1] %v85
    %v87 = vld [vmem:[#allocation8] sm:$0x1]
    %v88 = vmul.f32 %v76, %v76
    %v89 = vrot.slane %v88, 4
    %v90 = vadd.f32 %v88, %v89
    %v91 = vrot.slane %v90, 2
    %v92 = vadd.f32 %v90, %v91
    %v93 = vrot.slane %v92, 1
    %v94 = vadd.f32 %v92, %v93
    %v95 = vadd.f32 %v87, %v94
    %96 = vst [vmem:[#allocation8] sm:$0x1] %v95
    // Predicated region
    $region22: #{tpu_custom_call.1} parent=1 // pred_check
      _
    $region23: #{tpu_custom_call.1} parent=1 // pred_check_branch
      %98 = sbr.rel (0) target = $region25
    $region24: #{tpu_custom_call.1} parent=1 // pred_region
      %100 = vsyncadd [#allocation4], 0
      %s102 = sshll.u32 [#allocation7], 4
      %s103 = int_to_ptr.vmem [resolvable:$true] %s102
      %s104 = sshll.u32 %s2, 4
      %s105 = int_to_ptr.hbm [resolvable:$true] %s104
      %107 = dma.vmem_to_hbm [thread:$0]  %s103, 16, %s105, [#allocation4]
    $region25: #{tpu_custom_call.1} parent=1 // pred_fallthru
      _
    // Predicated region
    $region26: #{tpu_custom_call.1} parent=1 // pred_check
      _
    $region27: #{tpu_custom_call.1} parent=1 // pred_check_branch
      %109 = sbr.rel (0) target = $region29
    $region28: #{tpu_custom_call.1} parent=1 // pred_region
      %111 = vsyncadd [#allocation9], 0
      %s113 = sshll.u32 [#allocation8], 4
      %s114 = int_to_ptr.vmem [resolvable:$true] %s113
      %s115 = sshll.u32 %s3, 4
      %s116 = int_to_ptr.hbm [resolvable:$true] %s115
      %118 = dma.vmem_to_hbm [thread:$0]  %s114, 16, %s116, [#allocation9]
    $region29: #{tpu_custom_call.1} parent=1 // pred_fallthru
      _
    // Predicated region
    $region30: #{tpu_custom_call.1} parent=1 // pred_check
      _
    $region31: #{tpu_custom_call.1} parent=1 // pred_check_branch
      %120 = sbr.rel (0) target = $region33
    $region32: #{tpu_custom_call.1} parent=1 // pred_region
      %122 = dma.done [#allocation4], 16
    $region33: #{tpu_custom_call.1} parent=1 // pred_fallthru
      _
    // Predicated region
    $region34: #{tpu_custom_call.1} parent=1 // pred_check
      _
    $region35: #{tpu_custom_call.1} parent=1 // pred_check_branch
      %124 = sbr.rel (0) target = $region37
    $region36: #{tpu_custom_call.1} parent=1 // pred_region
      %126 = dma.done [#allocation9], 16
    $region37: #{tpu_custom_call.1} parent=1 // pred_fallthru
      _
    %127 = vsyncpa [#allocation3], 1
    %128 = vsyncpa [#allocation6], 1
    %129 = vsyncpa [#allocation4], 1
    %130 = vsyncpa [#allocation9], 1

</llo_original>
